<compile_context>
chip_gen: v5e
topology: v5e:2x2
jax: 0.10.0
libtpu: 0.0.40
codegen_flags: <defaults>
</compile_context>

<pallas_src>
import jax
import jax.numpy as jnp
import numpy as np
from jax.experimental import pallas as pl
from jax.experimental.pallas import tpu as pltpu


def _round_up(n, m):
    return ((n + m - 1) // m) * m


# ----------------------------- Pallas kernel --------------------------------
def fused_lstm_kernel(x_ref, w0_ref, b0_ref, wr_ref, br_ref, wlin_ref, blin_ref,
                      y_ref, h_scratch):
    """Grid axis = recurrent layers (L-1 steps).  Step 0 also runs layer 0;
    the last step also runs the final Linear.  h is carried in VMEM scratch."""
    l = pl.program_id(0)
    n_rec = pl.num_programs(0)

    def cell(inp_f32, w_bf16, b_f32):
        # w_bf16: (Din, 3*Hp) pre-transposed fused [i | g | o] gates (bf16)
        # b_f32 : (1, 3*Hp) fused (b_ih + b_hh) biases (f32)
        hp = w_bf16.shape[1] // 3
        gates = jnp.dot(inp_f32.astype(jnp.bfloat16), w_bf16,
                        preferred_element_type=jnp.float32) + b_f32   # (B, 3*Hp) f32
        i = jax.nn.sigmoid(gates[:, :hp])
        g = jnp.tanh(gates[:, hp:2 * hp])
        o = jax.nn.sigmoid(gates[:, 2 * hp:])
        c = i * g                      # f * c_prev == 0 (zero-init c, seq_len == 1)
        return o * jnp.tanh(c)

    # Layer 0 (input_dim -> Hp), only at the first grid step.
    @pl.when(l == 0)
    def _():
        h_scratch[...] = cell(x_ref[...].astype(jnp.float32),
                              w0_ref[...], b0_ref[...])

    # Recurrent layer (l + 1): per-layer weights DMA'd by BlockSpec (double-buffered).
    h_scratch[...] = cell(h_scratch[...], wr_ref[...], br_ref[...])

    # Final Linear(H -> 1) as VPU multiply + lane reduction (keeps MXU out of a
    # 1-column matmul).  Padded columns of h and wlin are exactly zero.
    @pl.when(l == n_rec - 1)
    def _():
        h = h_scratch[...]                                   # (B, Hp) f32
        y = jnp.sum(h * wlin_ref[...], axis=-1, keepdims=True) + blin_ref[...]
        y_ref[...] = y.astype(y_ref.dtype)


# ------------------------------- wrapper -------------------------------------
def lstm_forward(x, w0, b0, wr, br, wlin, blin):
    B, D = x.shape
    n_rec, Hp, H3 = wr.shape          # (L-1, Hp, 3*Hp)

    return pl.pallas_call(
        fused_lstm_kernel,
        out_shape=jax.ShapeDtypeStruct((B, 1), jnp.float32),
        grid_spec=pltpu.PrefetchScalarGridSpec(
            num_scalar_prefetch=0,
            grid=(n_rec,),
            in_specs=[
                pl.BlockSpec((B, D), lambda l: (0, 0)),            # x      (resident)
                pl.BlockSpec((D, H3), lambda l: (0, 0)),           # w0     (resident, bf16)
                pl.BlockSpec((1, H3), lambda l: (0, 0)),           # b0     (resident)
                pl.BlockSpec((None, Hp, H3), lambda l: (l, 0, 0)),  # wr[l]  (streamed, bf16)
                pl.BlockSpec((None, 1, H3), lambda l: (l, 0, 0)),   # br[l]  (streamed)
                pl.BlockSpec((1, Hp), lambda l: (0, 0)),           # wlin   (resident)
                pl.BlockSpec((1, 1), lambda l: (0, 0)),            # blin   (resident)
            ],
            out_specs=pl.BlockSpec((B, 1), lambda l: (0, 0)),
            scratch_shapes=[pltpu.VMEM((B, Hp), jnp.float32)],      # carried h
        ),
        compiler_params=pltpu.CompilerParams(
            dimension_semantics=("arbitrary",)),                    # layers are sequential
    )(x, w0, b0, wr, br, wlin, blin)


# ----------------------- parameter construction / packing ---------------------
# PyTorch gate order in the stacked (4H, Din) weight: i, f, g, o
_GATE_I, _GATE_F, _GATE_G, _GATE_O = 0, 1, 2, 3


def init_raw_params(key, input_dim, hidden_dim, output_dim, num_layers):
    """Raw PyTorch-layout parameters, uniform(-1/sqrt(H), 1/sqrt(H))."""
    H = hidden_dim
    k = 1.0 / np.sqrt(H)
    keys = jax.random.split(key, num_layers + 1)
    layers = []
    for layer in range(num_layers):
        din = input_dim if layer == 0 else H
        ks = jax.random.split(keys[layer], 4)
        w_ih = jax.random.uniform(ks[0], (4 * H, din), jnp.float32, -k, k)
        w_hh = jax.random.uniform(ks[1], (4 * H, H), jnp.float32, -k, k)
        b_ih = jax.random.uniform(ks[2], (4 * H,), jnp.float32, -k, k)
        b_hh = jax.random.uniform(ks[3], (4 * H,), jnp.float32, -k, k)
        layers.append((w_ih, w_hh, b_ih, b_hh))
    klin = jax.random.split(keys[num_layers], 2)
    wlin = jax.random.uniform(klin[0], (output_dim, H), jnp.float32, -k, k)
    blin = jax.random.uniform(klin[1], (output_dim,), jnp.float32, -k, k)
    return layers, wlin, blin


def _pack_layer(w_ih, b_ih, b_hh, H, Hp, pad_in_to=None):
    """Fuse i/g/o gates -> pre-transposed (Din, 3*Hp) bf16 weight + (1, 3*Hp) f32 bias."""
    din = w_ih.shape[1]
    w4 = w_ih.reshape(4, H, din)
    b4 = (b_ih + b_hh).reshape(4, H)

    def gate_w(g):
        wt = w4[g].T                                        # (Din, H), already transposed
        return jnp.pad(wt, ((0, 0), (0, Hp - H)))           # zero-pad lanes -> (Din, Hp)

    def gate_b(g):
        return jnp.pad(b4[g], (0, Hp - H))

    w_fused = jnp.concatenate([gate_w(g) for g in (_GATE_I, _GATE_G, _GATE_O)], axis=1)
    b_fused = jnp.concatenate([gate_b(g) for g in (_GATE_I, _GATE_G, _GATE_O)])[None, :]
    if pad_in_to is not None and pad_in_to > din:
        w_fused = jnp.pad(w_fused, ((0, pad_in_to - din), (0, 0)))
    return w_fused.astype(jnp.bfloat16), b_fused.astype(jnp.float32)


def pack_params(layers, wlin, blin, hidden_dim):
    H = hidden_dim
    Hp = _round_up(H, 128)                                  # lane-dense gate outputs

    w_ih0, _, b_ih0, b_hh0 = layers[0]
    w0, b0 = _pack_layer(w_ih0, b_ih0, b_hh0, H, Hp, pad_in_to=None)

    wr_list, br_list = [], []
    for (w_ih, _, b_ih, b_hh) in layers[1:]:
        w, b = _pack_layer(w_ih, b_ih, b_hh, H, Hp, pad_in_to=Hp)
        wr_list.append(w)
        br_list.append(b)
    wr = jnp.stack(wr_list)                                 # (L-1, Hp, 3*Hp) bf16
    br = jnp.stack(br_list)                                 # (L-1, 1, 3*Hp)  f32

    wlin_p = jnp.pad(wlin, ((0, 0), (0, Hp - H))).astype(jnp.float32)   # (1, Hp)
    blin_p = blin.reshape(1, -1).astype(jnp.float32)                     # (1, 1)
    return w0, b0, wr, br, wlin_p, blin_p


# --------------------------- pure-JAX f32 reference ----------------------------
def lstm_ref(x, layers, wlin, blin):
    """Full PyTorch LSTM cell math (incl. f-gate and W_hh with h0=c0=0), f32."""
    B = x.shape[0]
    h = x
    for (w_ih, w_hh, b_ih, b_hh) in layers:
        H = w_hh.shape[1]
        h_prev = jnp.zeros((B, H), jnp.float32)
        c_prev = jnp.zeros((B, H), jnp.float32)
        gates = h @ w_ih.T + h_prev @ w_hh.T + b_ih + b_hh
        i, f, g, o = jnp.split(gates, 4, axis=-1)
        i, f, o = jax.nn.sigmoid(i), jax.nn.sigmoid(f), jax.nn.sigmoid(o)
        g = jnp.tanh(g)
        c = f * c_prev + i * g
        h = o * jnp.tanh(c)
    return h @ wlin.T + blin


# ---------------------------------- main --------------------------------------
if __name__ == "__main__":
    # Small shapes consistent with the module (defaults 600/15/10 scaled down).
    B, D, H, L, OUT = 8, 64, 16, 4, 1
    assert L >= 2 and OUT == 1

    key = jax.random.PRNGKey(0)
    kx, kp = jax.random.split(key)
    x = jax.random.normal(kx, (B, D), jnp.float32)   # PyTorch input before .view(B, 1, -1)

    layers, wlin, blin = init_raw_params(kp, D, H, OUT, L)
    packed = pack_params(layers, wlin, blin, H)

    y = lstm_forward(x, *packed)
    y = jax.block_until_ready(y)

    y_ref = lstm_ref(x, layers, wlin, blin)
    assert y.shape == (B, OUT)
    # bf16 weights in the kernel vs f32 reference -> loose tolerance.
    np.testing.assert_allclose(np.asarray(y), np.asarray(y_ref), rtol=3e-2, atol=3e-2)
    print("KERNEL_OK")
</pallas_src>

<mosaic_0001>
module attributes {stable_mosaic.version = 11 : i64} {
  func.func @fused_lstm_kernel(%arg0: i32, %arg1: memref<8x64xf32, #tpu.memory_space<vmem>>, %arg2: memref<64x384xbf16, #tpu.memory_space<vmem>>, %arg3: memref<1x384xf32, #tpu.memory_space<vmem>>, %arg4: memref<1x128x384xbf16, #tpu.memory_space<vmem>>, %arg5: memref<1x1x384xf32, #tpu.memory_space<vmem>>, %arg6: memref<1x128xf32, #tpu.memory_space<vmem>>, %arg7: memref<1x1xf32, #tpu.memory_space<vmem>>, %arg8: memref<8x1xf32, #tpu.memory_space<vmem>>, %arg9: memref<8x128xf32, #tpu.memory_space<vmem>>) attributes {dimension_semantics = [#tpu.dimension_semantics<arbitrary>], iteration_bounds = array<i64: 3>, scalar_prefetch = 0 : i64, scratch_operands = 1 : i64, tpu.core_type = #tpu.core_type<tc>, window_params = [{pipeline_mode = #tpu.pipeline_mode<synchronous>, transform_indices = @transform_0, window_bounds = array<i64: 8, 64>}, {pipeline_mode = #tpu.pipeline_mode<synchronous>, transform_indices = @transform_1, window_bounds = array<i64: 64, 384>}, {pipeline_mode = #tpu.pipeline_mode<synchronous>, transform_indices = @transform_2, window_bounds = array<i64: 1, 384>}, {transform_indices = @transform_3, window_bounds = array<i64: 1, 128, 384>}, {transform_indices = @transform_4, window_bounds = array<i64: 1, 1, 384>}, {pipeline_mode = #tpu.pipeline_mode<synchronous>, transform_indices = @transform_5, window_bounds = array<i64: 1, 128>}, {pipeline_mode = #tpu.pipeline_mode<synchronous>, transform_indices = @transform_6, window_bounds = array<i64: 1, 1>}, {pipeline_mode = #tpu.pipeline_mode<synchronous>, transform_indices = @transform_7, window_bounds = array<i64: 8, 1>}]} {
    %c0_i32 = arith.constant 0 : i32
    %0 = arith.cmpi eq, %arg0, %c0_i32 : i32
    %1 = arith.extui %0 : i1 to i32
    %c0_i32_0 = arith.constant 0 : i32
    %2 = arith.cmpi ne, %1, %c0_i32_0 : i32
    scf.if %2 {
      %c0_13 = arith.constant 0 : index
      %c0_14 = arith.constant 0 : index
      %33 = vector.load %arg1[%c0_13, %c0_14] : memref<8x64xf32, #tpu.memory_space<vmem>>, vector<8x64xf32>
      %c0_15 = arith.constant 0 : index
      %c0_16 = arith.constant 0 : index
      %34 = vector.load %arg2[%c0_15, %c0_16] : memref<64x384xbf16, #tpu.memory_space<vmem>>, vector<64x384xbf16>
      %c0_17 = arith.constant 0 : index
      %c0_18 = arith.constant 0 : index
      %35 = vector.load %arg3[%c0_17, %c0_18] : memref<1x384xf32, #tpu.memory_space<vmem>>, vector<1x384xf32>
      %36 = arith.truncf %33 : vector<8x64xf32> to vector<8x64xbf16>
      %cst_19 = arith.constant dense<0.000000e+00> : vector<8x384xf32>
      %37 = tpu.matmul %36, %34, %cst_19 {dimension_numbers = #tpu.dot_dimension_numbers<[1], [0], [0], [1], [0, 0, 1, 1], [], []>} : vector<8x64xbf16>, vector<64x384xbf16>, vector<8x384xf32> -> vector<8x384xf32>
      %38 = vector.broadcast %35 : vector<1x384xf32> to vector<8x384xf32>
      %39 = arith.addf %37, %38 : vector<8x384xf32>
      %40 = vector.extract_strided_slice %39 {offsets = [0, 0], sizes = [8, 128], strides = [1, 1]} : vector<8x384xf32> to vector<8x128xf32>
      %41 = arith.negf %40 : vector<8x128xf32>
      %42 = math.exp %41 : vector<8x128xf32>
      %cst_20 = arith.constant 1.000000e+00 : f32
      %43 = vector.broadcast %cst_20 : f32 to vector<8x128xf32>
      %44 = arith.addf %43, %42 : vector<8x128xf32>
      %45 = arith.divf %43, %44 : vector<8x128xf32>
      %46 = vector.extract_strided_slice %39 {offsets = [0, 128], sizes = [8, 128], strides = [1, 1]} : vector<8x384xf32> to vector<8x128xf32>
      %47 = math.tanh %46 : vector<8x128xf32>
      %48 = vector.extract_strided_slice %39 {offsets = [0, 256], sizes = [8, 128], strides = [1, 1]} : vector<8x384xf32> to vector<8x128xf32>
      %49 = arith.negf %48 : vector<8x128xf32>
      %50 = math.exp %49 : vector<8x128xf32>
      %cst_21 = arith.constant 1.000000e+00 : f32
      %51 = vector.broadcast %cst_21 : f32 to vector<8x128xf32>
      %52 = arith.addf %51, %50 : vector<8x128xf32>
      %53 = arith.divf %51, %52 : vector<8x128xf32>
      %54 = arith.mulf %45, %47 : vector<8x128xf32>
      %55 = math.tanh %54 : vector<8x128xf32>
      %56 = arith.mulf %53, %55 : vector<8x128xf32>
      %c0_22 = arith.constant 0 : index
      %c0_23 = arith.constant 0 : index
      %57 = vector.load %arg9[%c0_22, %c0_23] : memref<8x128xf32, #tpu.memory_space<vmem>>, vector<8x128xf32>
      tpu.vector_store %arg9[%c0_22, %c0_23], %56 {strides = array<i32>} : memref<8x128xf32, #tpu.memory_space<vmem>>, vector<8x128xf32>,
    } else {
    }
    %c0 = arith.constant 0 : index
    %c0_1 = arith.constant 0 : index
    %3 = vector.load %arg9[%c0, %c0_1] : memref<8x128xf32, #tpu.memory_space<vmem>>, vector<8x128xf32>
    %c0_2 = arith.constant 0 : index
    %c0_3 = arith.constant 0 : index
    %c0_4 = arith.constant 0 : index
    %4 = vector.load %arg4[%c0_2, %c0_3, %c0_4] : memref<1x128x384xbf16, #tpu.memory_space<vmem>>, vector<1x128x384xbf16>
    %5 = vector.shape_cast %4 : vector<1x128x384xbf16> to vector<128x384xbf16>
    %c0_5 = arith.constant 0 : index
    %c0_6 = arith.constant 0 : index
    %c0_7 = arith.constant 0 : index
    %6 = vector.load %arg5[%c0_5, %c0_6, %c0_7] : memref<1x1x384xf32, #tpu.memory_space<vmem>>, vector<1x1x384xf32>
    %7 = vector.shape_cast %6 : vector<1x1x384xf32> to vector<1x384xf32>
    %8 = arith.truncf %3 : vector<8x128xf32> to vector<8x128xbf16>
    %cst = arith.constant dense<0.000000e+00> : vector<8x384xf32>
    %9 = tpu.matmul %8, %5, %cst {dimension_numbers = #tpu.dot_dimension_numbers<[1], [0], [0], [1], [0, 0, 1, 1], [], []>} : vector<8x128xbf16>, vector<128x384xbf16>, vector<8x384xf32> -> vector<8x384xf32>
    %10 = vector.broadcast %7 : vector<1x384xf32> to vector<8x384xf32>
    %11 = arith.addf %9, %10 : vector<8x384xf32>
    %12 = vector.extract_strided_slice %11 {offsets = [0, 0], sizes = [8, 128], strides = [1, 1]} : vector<8x384xf32> to vector<8x128xf32>
    %13 = arith.negf %12 : vector<8x128xf32>
    %14 = math.exp %13 : vector<8x128xf32>
    %cst_8 = arith.constant 1.000000e+00 : f32
    %15 = vector.broadcast %cst_8 : f32 to vector<8x128xf32>
    %16 = arith.addf %15, %14 : vector<8x128xf32>
    %17 = arith.divf %15, %16 : vector<8x128xf32>
    %18 = vector.extract_strided_slice %11 {offsets = [0, 128], sizes = [8, 128], strides = [1, 1]} : vector<8x384xf32> to vector<8x128xf32>
    %19 = math.tanh %18 : vector<8x128xf32>
    %20 = vector.extract_strided_slice %11 {offsets = [0, 256], sizes = [8, 128], strides = [1, 1]} : vector<8x384xf32> to vector<8x128xf32>
    %21 = arith.negf %20 : vector<8x128xf32>
    %22 = math.exp %21 : vector<8x128xf32>
    %cst_9 = arith.constant 1.000000e+00 : f32
    %23 = vector.broadcast %cst_9 : f32 to vector<8x128xf32>
    %24 = arith.addf %23, %22 : vector<8x128xf32>
    %25 = arith.divf %23, %24 : vector<8x128xf32>
    %26 = arith.mulf %17, %19 : vector<8x128xf32>
    %27 = math.tanh %26 : vector<8x128xf32>
    %28 = arith.mulf %25, %27 : vector<8x128xf32>
    %c0_10 = arith.constant 0 : index
    %c0_11 = arith.constant 0 : index
    %29 = vector.load %arg9[%c0_10, %c0_11] : memref<8x128xf32, #tpu.memory_space<vmem>>, vector<8x128xf32>
    tpu.vector_store %arg9[%c0_10, %c0_11], %28 {strides = array<i32>} : memref<8x128xf32, #tpu.memory_space<vmem>>, vector<8x128xf32>,
    %c2_i32 = arith.constant 2 : i32
    %30 = arith.cmpi eq, %arg0, %c2_i32 : i32
    %31 = arith.extui %30 : i1 to i32
    %c0_i32_12 = arith.constant 0 : i32
    %32 = arith.cmpi ne, %31, %c0_i32_12 : i32
    scf.if %32 {
      %c0_13 = arith.constant 0 : index
      %c0_14 = arith.constant 0 : index
      %33 = vector.load %arg9[%c0_13, %c0_14] : memref<8x128xf32, #tpu.memory_space<vmem>>, vector<8x128xf32>
      %c0_15 = arith.constant 0 : index
      %c0_16 = arith.constant 0 : index
      %34 = vector.load %arg6[%c0_15, %c0_16] : memref<1x128xf32, #tpu.memory_space<vmem>>, vector<1x128xf32>
      %35 = vector.broadcast %34 : vector<1x128xf32> to vector<8x128xf32>
      %36 = arith.mulf %33, %35 : vector<8x128xf32>
      %cst_17 = arith.constant dense<0.000000e+00> : vector<8xf32>
      %37 = vector.multi_reduction <add>, %36, %cst_17 [1] : vector<8x128xf32> to vector<8xf32>
      %38 = vector.shape_cast %37 : vector<8xf32> to vector<8x1xf32>
      %c0_18 = arith.constant 0 : index
      %c0_19 = arith.constant 0 : index
      %39 = vector.load %arg7[%c0_18, %c0_19] : memref<1x1xf32, #tpu.memory_space<vmem>>, vector<1x1xf32>
      %40 = vector.broadcast %39 : vector<1x1xf32> to vector<8x1xf32>
      %41 = arith.addf %38, %40 : vector<8x1xf32>
      %c0_20 = arith.constant 0 : index
      %c0_21 = arith.constant 0 : index
      %42 = vector.load %arg8[%c0_20, %c0_21] : memref<8x1xf32, #tpu.memory_space<vmem>>, vector<8x1xf32>
      tpu.vector_store %arg8[%c0_20, %c0_21], %41 {strides = array<i32>} : memref<8x1xf32, #tpu.memory_space<vmem>>, vector<8x1xf32>,
    } else {
    }
    return
  }
  func.func @transform_0(%arg0: i32) -> (i32, i32) {
    %c0_i32 = arith.constant 0 : i32
    %c0_i32_0 = arith.constant 0 : i32
    %c0_i32_1 = arith.constant 0 : i32
    return %c0_i32, %c0_i32_0 : i32, i32
  }
  func.func @transform_1(%arg0: i32) -> (i32, i32) {
    %c0_i32 = arith.constant 0 : i32
    %c0_i32_0 = arith.constant 0 : i32
    %c0_i32_1 = arith.constant 0 : i32
    return %c0_i32, %c0_i32_0 : i32, i32
  }
  func.func @transform_2(%arg0: i32) -> (i32, i32) {
    %c0_i32 = arith.constant 0 : i32
    %c0_i32_0 = arith.constant 0 : i32
    %c0_i32_1 = arith.constant 0 : i32
    return %c0_i32, %c0_i32_0 : i32, i32
  }
  func.func @transform_3(%arg0: i32) -> (i32, i32, i32) {
    %c0_i32 = arith.constant 0 : i32
    %c0_i32_0 = arith.constant 0 : i32
    %c0_i32_1 = arith.constant 0 : i32
    return %arg0, %c0_i32, %c0_i32_0 : i32, i32, i32
  }
  func.func @transform_4(%arg0: i32) -> (i32, i32, i32) {
    %c0_i32 = arith.constant 0 : i32
    %c0_i32_0 = arith.constant 0 : i32
    %c0_i32_1 = arith.constant 0 : i32
    return %arg0, %c0_i32, %c0_i32_0 : i32, i32, i32
  }
  func.func @transform_5(%arg0: i32) -> (i32, i32) {
    %c0_i32 = arith.constant 0 : i32
    %c0_i32_0 = arith.constant 0 : i32
    %c0_i32_1 = arith.constant 0 : i32
    return %c0_i32, %c0_i32_0 : i32, i32
  }
  func.func @transform_6(%arg0: i32) -> (i32, i32) {
    %c0_i32 = arith.constant 0 : i32
    %c0_i32_0 = arith.constant 0 : i32
    %c0_i32_1 = arith.constant 0 : i32
    return %c0_i32, %c0_i32_0 : i32, i32
  }
  func.func @transform_7(%arg0: i32) -> (i32, i32) {
    %c0_i32 = arith.constant 0 : i32
    %c0_i32_0 = arith.constant 0 : i32
    %c0_i32_1 = arith.constant 0 : i32
    return %c0_i32, %c0_i32_0 : i32, i32
  }
}

</mosaic_0001>

<llo_original>
// kernel: tpu_custom_call.1
$region0: #{tpu_custom_call.1}
  #allocation0 [shape = 'u32[]', space=smem, size = 0x4, offset = 0x4, fixed_abs, tag = 'smem constant byte address 0x4 - core index']
  #allocation1 [shape = 'u32[72,128]{1,0:T(1,128)}', space=vmem, size = 0x9000, scoped, tag = 'internal scratch']
  #allocation2 [shape = 'f32[8,128]{1,0:T(8,128)}', space=vmem, size = 0x1000, scoped, tag = 'scratch operand']
  #allocation3 [shape = 'f32[1,1]{1,0:T(1,128)S(1)}', space=vmem, size = 0x200, scoped, tag = 'scoped memory for tpu_custom_call.1']
  %s0 = inlined_call_operand.hbm [shape: f32[8,64], index: 0, kind: input, shape index: {}]
  %s1 = inlined_call_operand.hbm [shape: bf16[64,384], index: 1, kind: input, shape index: {}]
  %s2 = inlined_call_operand.vmem [shape: f32[1,384], index: 2, kind: input, shape index: {}]
  %s3 = inlined_call_operand.hbm [shape: bf16[3,128,384], index: 3, kind: input, shape index: {}]
  %s4 = inlined_call_operand.hbm [shape: f32[3,1,384], index: 4, kind: input, shape index: {}]
  %s5 = inlined_call_operand.vmem [shape: f32[1,128], index: 5, kind: input, shape index: {}]
  %s6 = inlined_call_operand.<no memory space> [shape: f32[1,1], index: 6, kind: input, shape index: {}]
  %s7 = inlined_call_operand.vmem [shape: f32[8,1], index: 7, kind: output, shape index: {}]
  %s8 = sld [smem:[#allocation0]]
  $region85: #{tpu_custom_call.1} parent=0
    _
  %s10 = ssub.s32 1, %s8
  %s11 = scalar_select 0, %s10, %s8
  %v12 = vstv %s6
  %13 = vst [vmem:[#allocation3] sm:$0x1] %v12
  $region1: #{tpu_custom_call.1} parent=0
    #allocation4 [shape = 'u8[4096]{0}', space=vmem, size = 0x1000, scoped, tag = 'input window, operand 0, single buffered']
    #allocation5 [shape = 's32[2]{0}', space=sflag, size = 0x8, scoped, tag = 'scoped memory for tpu_custom_call.1']
    #allocation6 [shape = 'u8[49152]{0}', space=vmem, size = 0xc000, scoped, tag = 'input window, operand 1, single buffered']
    #allocation7 [shape = 's32[1]{0}', space=sflag, size = 0x4, scoped, tag = 'scoped memory for tpu_custom_call.1']
    #allocation8 [shape = 'u8[196608]{0}', space=vmem, size = 0x30000, scoped, tag = 'input window, operand 3']
    #allocation9 [shape = 'u8[3072]{0}', space=vmem, size = 0xc00, scoped, tag = 'input window, operand 4']
    %14 = vsyncpa [#allocation5], 0
    %15 = vsyncpa [#allocation7], 0
    loop: start=0, step=1, limit=5
    $region2: #{tpu_custom_call.1} parent=1 // loop_pre_header
      _
    $region3: #{tpu_custom_call.1} parent=1 // loop_header
      %s17 = sphi 0, %s21
      %p18 = scmp.ge.s32.totalorder %s17, 5
      %s25 = sphi 0, %s25
      %s27 = sphi 0, %s25
      %s28 = sphi 0, %s27
      %s42 = sphi 0, %s28
      %s46 = sphi 0, %s46
      %s48 = sphi 0, %s46
      %s49 = sphi 0, %s48
      %s63 = sphi 0, %s49
      %s67 = sphi 0, %s67
      %s69 = sphi 0, %s67
      %s70 = sphi 0, %s69
      %s84 = sphi 0, %s70
      %s90 = sphi 0, %s92
      %s93 = sphi 0, %s90
      %s94 = sphi 0, %s93
      %s110 = sphi 0, %s94
      %s116 = sphi 0, %s118
      %s119 = sphi 0, %s116
      %s120 = sphi 0, %s119
      %s136 = sphi 0, %s120
      %s140 = sphi 0, %s140
      %s142 = sphi 0, %s140
      %s143 = sphi 0, %s142
      %s157 = sphi 0, %s143
      %s161 = sphi 0, %s161
      %s163 = sphi 0, %s161
      %s164 = sphi 0, %s163
      %s178 = sphi 0, %s164
      %s182 = sphi 0, %s182
      %s184 = sphi 0, %s182
      %s185 = sphi 0, %s184
      %s199 = sphi 0, %s185
    $region4: #{tpu_custom_call.1} parent=1 // loop_header_branch
      %20 = sbr.rel (%p18) target = $region8
    $region5: #{tpu_custom_call.1} parent=1 // loop_body
      %s22 = ssub.s32 %s17, 1
      %s23 = ssub.s32 %s17, 2
      %s24 = sadd.s32 %s17, 1
      %s26 = sadd.s32 %s25, 1
      %p29 = scmp.eq.s32.totalorder %s17, 2
      %p30 = scmp.ne.s32.totalorder %s25, %s27
      %p31 = scmp.eq.s32.totalorder %s17, 0
      %p32 = por %p30, %p31
      %p33 = scmp.ne.s32.totalorder %s25, %s27
      %p34 = scmp.eq.s32.totalorder %s22, 2
      %p35 = por %p33, %p34
      %p36 = scmp.ne.s32.totalorder %s27, %s28
      %p37 = scmp.eq.s32.totalorder %s22, 0
      %p38 = por %p36, %p37
      %p39 = scmp.ne.s32.totalorder %s27, %s28
      %p40 = scmp.eq.s32.totalorder %s23, 2
      %p41 = por %p39, %p40
      %p43 = scmp.ne.s32.totalorder %s28, %s42
      %p44 = scmp.eq.s32.totalorder %s23, 0
      %p45 = por %p43, %p44
      %s47 = sadd.s32 %s46, 1
      %p50 = scmp.eq.s32.totalorder %s17, 2
      %p51 = scmp.ne.s32.totalorder %s46, %s48
      %p52 = scmp.eq.s32.totalorder %s17, 0
      %p53 = por %p51, %p52
      %p54 = scmp.ne.s32.totalorder %s46, %s48
      %p55 = scmp.eq.s32.totalorder %s22, 2
      %p56 = por %p54, %p55
      %p57 = scmp.ne.s32.totalorder %s48, %s49
      %p58 = scmp.eq.s32.totalorder %s22, 0
      %p59 = por %p57, %p58
      %p60 = scmp.ne.s32.totalorder %s48, %s49
      %p61 = scmp.eq.s32.totalorder %s23, 2
      %p62 = por %p60, %p61
      %p64 = scmp.ne.s32.totalorder %s49, %s63
      %p65 = scmp.eq.s32.totalorder %s23, 0
      %p66 = por %p64, %p65
      %s68 = sadd.s32 %s67, 1
      %p71 = scmp.eq.s32.totalorder %s17, 2
      %p72 = scmp.ne.s32.totalorder %s67, %s69
      %p73 = scmp.eq.s32.totalorder %s17, 0
      %p74 = por %p72, %p73
      %p75 = scmp.ne.s32.totalorder %s67, %s69
      %p76 = scmp.eq.s32.totalorder %s22, 2
      %p77 = por %p75, %p76
      %p78 = scmp.ne.s32.totalorder %s69, %s70
      %p79 = scmp.eq.s32.totalorder %s22, 0
      %p80 = por %p78, %p79
      %p81 = scmp.ne.s32.totalorder %s69, %s70
      %p82 = scmp.eq.s32.totalorder %s23, 2
      %p83 = por %p81, %p82
      %p85 = scmp.ne.s32.totalorder %s70, %s84
      %p86 = scmp.eq.s32.totalorder %s23, 0
      %p87 = por %p85, %p86
      %s88 = ssub.s32 %s17, %s24
      %p89 = scmp.eq.s32.totalorder %s88, 0
      %s91 = sadd.s32 %s90, 1
      %s92 = scalar_select %p89, %s90, %s91
      %p95 = pneg %p89
      %p96 = scmp.eq.s32.totalorder %s17, 2
      %p97 = por %p95, %p96
      %p98 = scmp.ne.s32.totalorder %s90, %s93
      %p99 = scmp.eq.s32.totalorder %s17, 0
      %p100 = por %p98, %p99
      %p101 = scmp.ne.s32.totalorder %s90, %s93
      %p102 = scmp.eq.s32.totalorder %s22, 2
      %p103 = por %p101, %p102
      %p104 = scmp.ne.s32.totalorder %s93, %s94
      %p105 = scmp.eq.s32.totalorder %s22, 0
      %p106 = por %p104, %p105
      %p107 = scmp.ne.s32.totalorder %s93, %s94
      %p108 = scmp.eq.s32.totalorder %s23, 2
      %p109 = por %p107, %p108
      %p111 = scmp.ne.s32.totalorder %s94, %s110
      %p112 = scmp.eq.s32.totalorder %s23, 0
      %p113 = por %p111, %p112
      %s114 = ssub.s32 %s17, %s24
      %p115 = scmp.eq.s32.totalorder %s114, 0
      %s117 = sadd.s32 %s116, 1
      %s118 = scalar_select %p115, %s116, %s117
      %p121 = pneg %p115
      %p122 = scmp.eq.s32.totalorder %s17, 2
      %p123 = por %p121, %p122
      %p124 = scmp.ne.s32.totalorder %s116, %s119
      %p125 = scmp.eq.s32.totalorder %s17, 0
      %p126 = por %p124, %p125
      %p127 = scmp.ne.s32.totalorder %s116, %s119
      %p128 = scmp.eq.s32.totalorder %s22, 2
      %p129 = por %p127, %p128
      %p130 = scmp.ne.s32.totalorder %s119, %s120
      %p131 = scmp.eq.s32.totalorder %s22, 0
      %p132 = por %p130, %p131
      %p133 = scmp.ne.s32.totalorder %s119, %s120
      %p134 = scmp.eq.s32.totalorder %s23, 2
      %p135 = por %p133, %p134
      %p137 = scmp.ne.s32.totalorder %s120, %s136
      %p138 = scmp.eq.s32.totalorder %s23, 0
      %p139 = por %p137, %p138
      %s141 = sadd.s32 %s140, 1
      %p144 = scmp.eq.s32.totalorder %s17, 2
      %p145 = scmp.ne.s32.totalorder %s140, %s142
      %p146 = scmp.eq.s32.totalorder %s17, 0
      %p147 = por %p145, %p146
      %p148 = scmp.ne.s32.totalorder %s140, %s142
      %p149 = scmp.eq.s32.totalorder %s22, 2
      %p150 = por %p148, %p149
      %p151 = scmp.ne.s32.totalorder %s142, %s143
      %p152 = scmp.eq.s32.totalorder %s22, 0
      %p153 = por %p151, %p152
      %p154 = scmp.ne.s32.totalorder %s142, %s143
      %p155 = scmp.eq.s32.totalorder %s23, 2
      %p156 = por %p154, %p155
      %p158 = scmp.ne.s32.totalorder %s143, %s157
      %p159 = scmp.eq.s32.totalorder %s23, 0
      %p160 = por %p158, %p159
      %s162 = sadd.s32 %s161, 1
      %p165 = scmp.eq.s32.totalorder %s17, 2
      %p166 = scmp.ne.s32.totalorder %s161, %s163
      %p167 = scmp.eq.s32.totalorder %s17, 0
      %p168 = por %p166, %p167
      %p169 = scmp.ne.s32.totalorder %s161, %s163
      %p170 = scmp.eq.s32.totalorder %s22, 2
      %p171 = por %p169, %p170
      %p172 = scmp.ne.s32.totalorder %s163, %s164
      %p173 = scmp.eq.s32.totalorder %s22, 0
      %p174 = por %p172, %p173
      %p175 = scmp.ne.s32.totalorder %s163, %s164
      %p176 = scmp.eq.s32.totalorder %s23, 2
      %p177 = por %p175, %p176
      %p179 = scmp.ne.s32.totalorder %s164, %s178
      %p180 = scmp.eq.s32.totalorder %s23, 0
      %p181 = por %p179, %p180
      %s183 = sadd.s32 %s182, 1
      %p186 = scmp.eq.s32.totalorder %s17, 2
      %p187 = scmp.ne.s32.totalorder %s182, %s184
      %p188 = scmp.eq.s32.totalorder %s17, 0
      %p189 = por %p187, %p188
      %p190 = scmp.ne.s32.totalorder %s182, %s184
      %p191 = scmp.eq.s32.totalorder %s22, 2
      %p192 = por %p190, %p191
      %p193 = scmp.ne.s32.totalorder %s184, %s185
      %p194 = scmp.eq.s32.totalorder %s22, 0
      %p195 = por %p193, %p194
      %p196 = scmp.ne.s32.totalorder %s184, %s185
      %p197 = scmp.eq.s32.totalorder %s23, 2
      %p198 = por %p196, %p197
      %p200 = scmp.ne.s32.totalorder %s185, %s199
      %p201 = scmp.eq.s32.totalorder %s23, 0
      %p202 = por %p200, %p201
      %p203 = scmp.le.s32.totalorder 1, %s17
      %p204 = scmp.lt.s32.totalorder %s17, 4
      %p205 = pnand %p203, %p204
      %p206 = pneg %p205
      // Predicated region
      $region9: #{tpu_custom_call.1} parent=5 // pred_check
        _
      $region10: #{tpu_custom_call.1} parent=5 // pred_check_branch
        %208 = sbr.rel (%p205) target = $region12
      $region11: #{tpu_custom_call.1} parent=5 // pred_region
        %s209 = ssub.s32 %s17, 1
        // Predicated region
        $region13: #{tpu_custom_call.1} parent=11 // pred_check
          %p210 = pneg %p38
        $region14: #{tpu_custom_call.1} parent=11 // pred_check_branch
          %212 = sbr.rel (%p210) target = $region16
        $region15: #{tpu_custom_call.1} parent=11 // pred_region
          %214 = vsyncadd [#allocation5], 0
          %s216 = sshll.u32 %s0, 4
          %s217 = int_to_ptr.hbm [resolvable:$true] %s216
          %s218 = sshll.u32 [#allocation4], 4
          %s219 = int_to_ptr.vmem [resolvable:$true] %s218
          %221 = dma.hbm_to_vmem [thread:$0]  %s217, 128, %s219, [#allocation5]
        $region16: #{tpu_custom_call.1} parent=11 // pred_fallthru
          _
        // Predicated region
        $region17: #{tpu_custom_call.1} parent=11 // pred_check
          %p222 = pneg %p59
        $region18: #{tpu_custom_call.1} parent=11 // pred_check_branch
          %224 = sbr.rel (%p222) target = $region20
        $region19: #{tpu_custom_call.1} parent=11 // pred_region
          %226 = vsyncadd [#allocation7], 0
          %s227 = sshll.u32 %s1, 4
          %s228 = int_to_ptr.hbm [resolvable:$true] %s227
          %s229 = sshll.u32 [#allocation6], 4
          %s230 = int_to_ptr.vmem [resolvable:$true] %s229
          %235 = dma.hbm_to_vmem [thread:$0]  %s228, 1536, %s230, [#allocation7], 192, 192, 12
        $region20: #{tpu_custom_call.1} parent=11 // pred_fallthru
          _
        // Predicated region
        $region21: #{tpu_custom_call.1} parent=11 // pred_check
          %p236 = pneg %p80
        $region22: #{tpu_custom_call.1} parent=11 // pred_check_branch
          %238 = sbr.rel (%p236) target = $region24
        $region23: #{tpu_custom_call.1} parent=11 // pred_region
          _
        $region24: #{tpu_custom_call.1} parent=11 // pred_fallthru
          _
        // Predicated region
        $region25: #{tpu_custom_call.1} parent=11 // pred_check
          %p239 = pneg %p153
        $region26: #{tpu_custom_call.1} parent=11 // pred_check_branch
          %241 = sbr.rel (%p239) target = $region28
        $region27: #{tpu_custom_call.1} parent=11 // pred_region
          _
        $region28: #{tpu_custom_call.1} parent=11 // pred_fallthru
          _
        // Predicated region
        $region29: #{tpu_custom_call.1} parent=11 // pred_check
          %p242 = pneg %p174
        $region30: #{tpu_custom_call.1} parent=11 // pred_check_branch
          %244 = sbr.rel (%p242) target = $region32
        $region31: #{tpu_custom_call.1} parent=11 // pred_region
          _
        $region32: #{tpu_custom_call.1} parent=11 // pred_fallthru
          _
      $region12: #{tpu_custom_call.1} parent=5 // pred_fallthru
        _
      %p245 = scmp.lt.s32.totalorder %s17, 3
      // Predicated region
      $region33: #{tpu_custom_call.1} parent=5 // pred_check
        %p246 = pneg %p245
      $region34: #{tpu_custom_call.1} parent=5 // pred_check_branch
        %248 = sbr.rel (%p246) target = $region36
      $region35: #{tpu_custom_call.1} parent=5 // pred_region
        // Predicated region
        $region37: #{tpu_custom_call.1} parent=35 // pred_check
          %p249 = pneg %p100
        $region38: #{tpu_custom_call.1} parent=35 // pred_check_branch
          %251 = sbr.rel (%p249) target = $region40
        $region39: #{tpu_custom_call.1} parent=35 // pred_region
          %s252 = sand.u32 %s17, 1
          %s253 = scalar_lea.sflag [#allocation5], %s252
          %s254 = sand.u32 %s90, 1
          %s255 = smul.addr %s254, 192
          %s256 = scalar_lea.vmem [#allocation8], %s255
          %258 = vsyncadd %s253, 0
          %s259 = smul.addr %s17, 48
          %s260 = smul.addr %s259, 4
          %s261 = scalar_lea.hbm %s3, %s260
          %s262 = sshll.u32 %s261, 4
          %s263 = int_to_ptr.hbm [resolvable:$true] %s262
          %s264 = sshll.u32 %s256, 4
          %s265 = int_to_ptr.vmem [resolvable:$true] %s264
          %270 = dma.hbm_to_vmem [thread:$0]  %s263, 3072, %s265, %s253, 192, 192, 12
        $region40: #{tpu_custom_call.1} parent=35 // pred_fallthru
          _
        // Predicated region
        $region41: #{tpu_custom_call.1} parent=35 // pred_check
          %p271 = pneg %p126
        $region42: #{tpu_custom_call.1} parent=35 // pred_check_branch
          %273 = sbr.rel (%p271) target = $region44
        $region43: #{tpu_custom_call.1} parent=35 // pred_region
          %s274 = sand.u32 %s17, 1
          %s275 = scalar_lea.sflag [#allocation5], %s274
          %s276 = sand.u32 %s116, 1
          %s277 = smul.addr %s276, 3
          %s278 = scalar_lea.vmem [#allocation9], %s277
          %280 = vsyncadd %s275, 0
          %s281 = smul.addr %s17, 3
          %s282 = scalar_lea.hbm %s4, %s281
          %s284 = sshll.u32 %s282, 4
          %s285 = int_to_ptr.hbm [resolvable:$true] %s284
          %s286 = sshll.u32 %s278, 4
          %s287 = int_to_ptr.vmem [resolvable:$true] %s286
          %289 = dma.hbm_to_vmem [thread:$0]  %s285, 48, %s287, %s275
        $region44: #{tpu_custom_call.1} parent=35 // pred_fallthru
          _
      $region36: #{tpu_custom_call.1} parent=5 // pred_fallthru
        _
      %p290 = scmp.le.s32.totalorder 1, %s17
      %p291 = scmp.lt.s32.totalorder %s17, 4
      %p292 = pnand %p290, %p291
      %p293 = pneg %p292
      // Predicated region
      $region45: #{tpu_custom_call.1} parent=5 // pred_check
        _
      $region46: #{tpu_custom_call.1} parent=5 // pred_check_branch
        %295 = sbr.rel (%p292) target = $region48
      $region47: #{tpu_custom_call.1} parent=5 // pred_region
        %s296 = ssub.s32 %s17, 1
        // Predicated region
        $region49: #{tpu_custom_call.1} parent=47 // pred_check
          %p297 = pneg %p38
        $region50: #{tpu_custom_call.1} parent=47 // pred_check_branch
          %299 = sbr.rel (%p297) target = $region52
        $region51: #{tpu_custom_call.1} parent=47 // pred_region
          %301 = dma.done [#allocation5], 128
        $region52: #{tpu_custom_call.1} parent=47 // pred_fallthru
          _
        // Predicated region
        $region53: #{tpu_custom_call.1} parent=47 // pred_check
          %p302 = pneg %p59
        $region54: #{tpu_custom_call.1} parent=47 // pred_check_branch
          %304 = sbr.rel (%p302) target = $region56
        $region55: #{tpu_custom_call.1} parent=47 // pred_region
          %306 = dma.done [#allocation7], 1536
        $region56: #{tpu_custom_call.1} parent=47 // pred_fallthru
          _
        %s307 = sand.u32 %s22, 1
        %s308 = scalar_lea.sflag [#allocation5], %s307
        %s309 = sand.u32 %s93, 1
        %s310 = smul.addr %s309, 192
        %s311 = scalar_lea.vmem [#allocation8], %s310
        // Predicated region
        $region57: #{tpu_custom_call.1} parent=47 // pred_check
          %p312 = pneg %p106
        $region58: #{tpu_custom_call.1} parent=47 // pred_check_branch
          %314 = sbr.rel (%p312) target = $region60
        $region59: #{tpu_custom_call.1} parent=47 // pred_region
          %316 = dma.done %s308, 3072
        $region60: #{tpu_custom_call.1} parent=47 // pred_fallthru
          _
        %s317 = sand.u32 %s22, 1
        %s318 = scalar_lea.sflag [#allocation5], %s317
        %s319 = sand.u32 %s119, 1
        %s320 = smul.addr %s319, 3
        %s321 = scalar_lea.vmem [#allocation9], %s320
        // Predicated region
        $region61: #{tpu_custom_call.1} parent=47 // pred_check
          %p322 = pneg %p132
        $region62: #{tpu_custom_call.1} parent=47 // pred_check_branch
          %324 = sbr.rel (%p322) target = $region64
        $region63: #{tpu_custom_call.1} parent=47 // pred_region
          %326 = dma.done %s318, 48
        $region64: #{tpu_custom_call.1} parent=47 // pred_fallthru
          _
        %p327 = pneg %p38
        %p328 = pneg %p35
        %p329 = pneg %p59
        %p330 = pneg %p56
        %p331 = pneg %p80
        %p332 = pneg %p77
        %s333 = sand.u32 %s22, 1
        %s334 = scalar_lea.sflag [#allocation5], %s333
        %s335 = sand.u32 %s93, 1
        %s336 = smul.addr %s335, 192
        %s337 = scalar_lea.vmem [#allocation8], %s336
        %p338 = pneg %p106
        %p339 = pneg %p103
        %s340 = sand.u32 %s22, 1
        %s341 = scalar_lea.sflag [#allocation5], %s340
        %s342 = sand.u32 %s119, 1
        %s343 = smul.addr %s342, 3
        %s344 = scalar_lea.vmem [#allocation9], %s343
        %p345 = pneg %p132
        %p346 = pneg %p129
        %p347 = pneg %p153
        %p348 = pneg %p150
        %p349 = pneg %p174
        %p350 = pneg %p171
        %p351 = pneg %p195
        %p352 = pneg %p192
        %p354 = scmp.eq.s32.totalorder %s22, 0
        // Predicated region
        $region65: #{tpu_custom_call.1} parent=47 // pred_check
          %p355 = pneg %p354
        $region66: #{tpu_custom_call.1} parent=47 // pred_check_branch
          %357 = sbr.rel (%p355) target = $region68
        $region67: #{tpu_custom_call.1} parent=47 // pred_region
          %v358 = vld [vmem:[#allocation4] sm:$0xff]
          %v359 = vld [vmem:[#allocation6] sm:$0xff]
          %v360 = vld [vmem:[#allocation6 + $0x8] sm:$0xf]
          %v361 = vld [vmem:[#allocation6 + $0xc] sm:$0xff]
          %v362 = vld [vmem:[#allocation6 + $0x14] sm:$0xf]
          %v363 = vld [vmem:[#allocation6 + $0x18] sm:$0xff]
          %v364 = vld [vmem:[#allocation6 + $0x20] sm:$0xf]
          %v365 = vld [vmem:[#allocation6 + $0x24] sm:$0xff]
          %v366 = vld [vmem:[#allocation6 + $0x2c] sm:$0xf]
          %v367 = vld [vmem:[#allocation6 + $0x30] sm:$0xff]
          %v368 = vld [vmem:[#allocation6 + $0x38] sm:$0xf]
          %v369 = vld [vmem:[#allocation6 + $0x3c] sm:$0xff]
          %v370 = vld [vmem:[#allocation6 + $0x44] sm:$0xf]
          %v371 = vld [vmem:[#allocation6 + $0x48] sm:$0xff]
          %v372 = vld [vmem:[#allocation6 + $0x50] sm:$0xf]
          %v373 = vld [vmem:[#allocation6 + $0x54] sm:$0xff]
          %v374 = vld [vmem:[#allocation6 + $0x5c] sm:$0xf]
          %v375 = vld [vmem:[%s2] sm:$0x7]
          %v376 = vpack.c.bf16 %v358, %v358
          %v378 = vperm.slane %v375, 0
          %v379 = vperm.slane %v375, 1
          %v380 = vperm.slane %v375, 2
          %v400 = vunpack.c.l.b16 %v359
          %v401 = vunpack.c.h.b16 %v359
          %v402 = vunpack.c.l.b16 %v360
          %v403 = vunpack.c.l.b16 %v361
          %v404 = vunpack.c.h.b16 %v361
          %v405 = vunpack.c.l.b16 %v362
          %v406 = vunpack.c.l.b16 %v363
          %v407 = vunpack.c.h.b16 %v363
          %v408 = vunpack.c.l.b16 %v364
          %v409 = vunpack.c.l.b16 %v365
          %v410 = vunpack.c.h.b16 %v365
          %v411 = vunpack.c.l.b16 %v366
          %v412 = vunpack.c.l.b16 %v367
          %v413 = vunpack.c.h.b16 %v367
          %v414 = vunpack.c.l.b16 %v368
          %v415 = vunpack.c.l.b16 %v369
          %v416 = vunpack.c.h.b16 %v369
          %v417 = vunpack.c.l.b16 %v370
          %v418 = vunpack.c.l.b16 %v371
          %v419 = vunpack.c.h.b16 %v371
          %v420 = vunpack.c.l.b16 %v372
          %v421 = vunpack.c.l.b16 %v373
          %v422 = vunpack.c.h.b16 %v373
          %v423 = vunpack.c.l.b16 %v374
          %v424 = vpack.c.b16 %v403, %v400
          %v425 = vpack.c.b16 %v404, %v401
          %v426 = vpack.c.b16 %v405, %v402
          %v427 = vpack.c.b16 %v409, %v406
          %v428 = vpack.c.b16 %v410, %v407
          %v429 = vpack.c.b16 %v411, %v408
          %v430 = vpack.c.b16 %v415, %v412
          %v431 = vpack.c.b16 %v416, %v413
          %v432 = vpack.c.b16 %v417, %v414
          %v433 = vpack.c.b16 %v421, %v418
          %v434 = vpack.c.b16 %v422, %v419
          %v435 = vpack.c.b16 %v423, %v420
          %vm448 = vcmask 523264
          %v450 = vsel %vm448, %v376, 0
          %452 = vmatpush.bf16.msra.mxu0 0
          %453 = vmatpush.bf16.msra.mxu0 0
          %454 = vmatpush.bf16.msra.mxu0 0
          %455 = vmatpush.bf16.msra.mxu0 0
          %456 = vmatpush.bf16.msra.mxu0 %v433
          %457 = vmatpush.bf16.msra.mxu0 %v430
          %458 = vmatpush.bf16.msra.mxu0 %v427
          %459 = vmatpush.bf16.msra.mxu0 %v424
          %460 = vmatmul.bf16.gmra.mxu0 %v450
          %v461 = vpop.f32.mrf.mxu0
          %v462 = vadd.f32 %v378, %v461
          %v463 = vpop.f32.mrf.mxu0
          %464 = vdwg.mxu0
          %465 = vmatpush.bf16.msra.mxu0 0
          %466 = vmatpush.bf16.msra.mxu0 0
          %467 = vmatpush.bf16.msra.mxu0 0
          %468 = vmatpush.bf16.msra.mxu0 0
          %469 = vmatpush.bf16.msra.mxu0 %v434
          %470 = vmatpush.bf16.msra.mxu0 %v431
          %471 = vmatpush.bf16.msra.mxu0 %v428
          %472 = vmatpush.bf16.msra.mxu0 %v425
          %473 = vmatmul.bf16.gmra.mxu0 %v450
          %v474 = vpop.f32.mrf.mxu0
          %v475 = vadd.f32 %v379, %v474
          %v476 = vpop.f32.mrf.mxu0
          %477 = vdwg.mxu0
          %478 = vmatpush.bf16.msra.mxu0 0
          %479 = vmatpush.bf16.msra.mxu0 0
          %480 = vmatpush.bf16.msra.mxu0 0
          %481 = vmatpush.bf16.msra.mxu0 0
          %482 = vmatpush.bf16.msra.mxu0 %v435
          %483 = vmatpush.bf16.msra.mxu0 %v432
          %484 = vmatpush.bf16.msra.mxu0 %v429
          %485 = vmatpush.bf16.msra.mxu0 %v426
          %486 = vmatmul.bf16.gmra.mxu0 %v450
          %v487 = vpop.f32.mrf.mxu0
          %v488 = vadd.f32 %v380, %v487
          %v489 = vpop.f32.mrf.mxu0
          %490 = vdwg.mxu0
          %v491 = vxor.u32 %v462, 2147483648
          %v492 = vmul.f32 %v491, 1.442695
          %v493 = vpow.pop %v492
          %v494 = vadd.f32 %v493, 1.0
          %v495 = vrcp.pop %v494
          %v496 = vmul.f32 %v494, %v495
          %v497 = vsub.f32 1.0, %v496
          %v498 = vmul.f32 %v495, %v497
          %v499 = vadd.f32 %v495, %v498
          %vm500 = vweird.f32 %v494
          %vm501 = vweird.f32 %v495
          %vm502 = vmor %vm500, %vm501
          %v503 = vsel %vm502, %v495, %v499
          %v504 = vand.u32 2147483647, %v494
          %vm505 = vcmp.eq.f32.partialorder %v504, 8.507059e+37
          %v506 = vand.u32 %v494, 2147483648
          %v507 = vor.u32 1.1754944e-38, %v506
          %v508 = vsel %vm505, %v507, %v503
          %v509 = vmul.f32 1.0, %v508
          %v510 = vtanh.pop %v475
          %v511 = vxor.u32 %v488, 2147483648
          %v512 = vmul.f32 %v511, 1.442695
          %v513 = vpow.pop %v512
          %v514 = vadd.f32 %v513, 1.0
          %v515 = vrcp.pop %v514
          %v516 = vmul.f32 %v514, %v515
          %v517 = vsub.f32 1.0, %v516
          %v518 = vmul.f32 %v515, %v517
          %v519 = vadd.f32 %v515, %v518
          %vm520 = vweird.f32 %v514
          %vm521 = vweird.f32 %v515
          %vm522 = vmor %vm520, %vm521
          %v523 = vsel %vm522, %v515, %v519
          %v524 = vand.u32 2147483647, %v514
          %vm525 = vcmp.eq.f32.partialorder %v524, 8.507059e+37
          %v526 = vand.u32 %v514, 2147483648
          %v527 = vor.u32 1.1754944e-38, %v526
          %v528 = vsel %vm525, %v527, %v523
          %v529 = vmul.f32 1.0, %v528
          %v530 = vmul.f32 %v509, %v510
          %v531 = vtanh.pop %v530
          %v532 = vmul.f32 %v529, %v531
          %533 = vst [vmem:[#allocation2] sm:$0xff] %v532
        $region68: #{tpu_custom_call.1} parent=47 // pred_fallthru
          _
        %v534 = vld [vmem:[#allocation2] sm:$0xff]
        %v535 = vld [vmem:[%s311] sm:$0xff]
        %v536 = vld [vmem:[%s311 + $0x8] sm:$0xf]
        %v537 = vld [vmem:[%s311 + $0xc] sm:$0xff]
        %v538 = vld [vmem:[%s311 + $0x14] sm:$0xf]
        %v539 = vld [vmem:[%s311 + $0x18] sm:$0xff]
        %v540 = vld [vmem:[%s311 + $0x20] sm:$0xf]
        %v541 = vld [vmem:[%s311 + $0x24] sm:$0xff]
        %v542 = vld [vmem:[%s311 + $0x2c] sm:$0xf]
        %v543 = vld [vmem:[%s311 + $0x30] sm:$0xff]
        %v544 = vld [vmem:[%s311 + $0x38] sm:$0xf]
        %v545 = vld [vmem:[%s311 + $0x3c] sm:$0xff]
        %v546 = vld [vmem:[%s311 + $0x44] sm:$0xf]
        %v547 = vld [vmem:[%s311 + $0x48] sm:$0xff]
        %v548 = vld [vmem:[%s311 + $0x50] sm:$0xf]
        %v549 = vld [vmem:[%s311 + $0x54] sm:$0xff]
        %v550 = vld [vmem:[%s311 + $0x5c] sm:$0xf]
        %v551 = vld [vmem:[%s311 + $0x60] sm:$0xff]
        %v552 = vld [vmem:[%s311 + $0x68] sm:$0xf]
        %v553 = vld [vmem:[%s311 + $0x6c] sm:$0xff]
        %v554 = vld [vmem:[%s311 + $0x74] sm:$0xf]
        %v555 = vld [vmem:[%s311 + $0x78] sm:$0xff]
        %v556 = vld [vmem:[%s311 + $0x80] sm:$0xf]
        %v557 = vld [vmem:[%s311 + $0x84] sm:$0xff]
        %v558 = vld [vmem:[%s311 + $0x8c] sm:$0xf]
        %v559 = vld [vmem:[%s311 + $0x90] sm:$0xff]
        %v560 = vld [vmem:[%s311 + $0x98] sm:$0xf]
        %v561 = vld [vmem:[%s311 + $0x9c] sm:$0xff]
        %v562 = vld [vmem:[%s311 + $0xa4] sm:$0xf]
        %v563 = vld [vmem:[%s311 + $0xa8] sm:$0xff]
        %v564 = vld [vmem:[%s311 + $0xb0] sm:$0xf]
        %v565 = vld [vmem:[%s311 + $0xb4] sm:$0xff]
        %v566 = vld [vmem:[%s311 + $0xbc] sm:$0xf]
        %v567 = vld [vmem:[%s321] sm:$0x7]
        %v568 = vpack.c.bf16 %v534, %v534
        %v570 = vperm.slane %v567, 0
        %v571 = vperm.slane %v567, 1
        %v572 = vperm.slane %v567, 2
        %v608 = vunpack.c.l.b16 %v535
        %v609 = vunpack.c.h.b16 %v535
        %v610 = vunpack.c.l.b16 %v536
        %v611 = vunpack.c.l.b16 %v537
        %v612 = vunpack.c.h.b16 %v537
        %v613 = vunpack.c.l.b16 %v538
        %v614 = vunpack.c.l.b16 %v539
        %v615 = vunpack.c.h.b16 %v539
        %v616 = vunpack.c.l.b16 %v540
        %v617 = vunpack.c.l.b16 %v541
        %v618 = vunpack.c.h.b16 %v541
        %v619 = vunpack.c.l.b16 %v542
        %v620 = vunpack.c.l.b16 %v543
        %v621 = vunpack.c.h.b16 %v543
        %v622 = vunpack.c.l.b16 %v544
        %v623 = vunpack.c.l.b16 %v545
        %v624 = vunpack.c.h.b16 %v545
        %v625 = vunpack.c.l.b16 %v546
        %v626 = vunpack.c.l.b16 %v547
        %v627 = vunpack.c.h.b16 %v547
        %v628 = vunpack.c.l.b16 %v548
        %v629 = vunpack.c.l.b16 %v549
        %v630 = vunpack.c.h.b16 %v549
        %v631 = vunpack.c.l.b16 %v550
        %v632 = vunpack.c.l.b16 %v551
        %v633 = vunpack.c.h.b16 %v551
        %v634 = vunpack.c.l.b16 %v552
        %v635 = vunpack.c.l.b16 %v553
        %v636 = vunpack.c.h.b16 %v553
        %v637 = vunpack.c.l.b16 %v554
        %v638 = vunpack.c.l.b16 %v555
        %v639 = vunpack.c.h.b16 %v555
        %v640 = vunpack.c.l.b16 %v556
        %v641 = vunpack.c.l.b16 %v557
        %v642 = vunpack.c.h.b16 %v557
        %v643 = vunpack.c.l.b16 %v558
        %v644 = vunpack.c.l.b16 %v559
        %v645 = vunpack.c.h.b16 %v559
        %v646 = vunpack.c.l.b16 %v560
        %v647 = vunpack.c.l.b16 %v561
        %v648 = vunpack.c.h.b16 %v561
        %v649 = vunpack.c.l.b16 %v562
        %v650 = vunpack.c.l.b16 %v563
        %v651 = vunpack.c.h.b16 %v563
        %v652 = vunpack.c.l.b16 %v564
        %v653 = vunpack.c.l.b16 %v565
        %v654 = vunpack.c.h.b16 %v565
        %v655 = vunpack.c.l.b16 %v566
        %v656 = vpack.c.b16 %v611, %v608
        %v657 = vpack.c.b16 %v612, %v609
        %v658 = vpack.c.b16 %v613, %v610
        %v659 = vpack.c.b16 %v617, %v614
        %v660 = vpack.c.b16 %v618, %v615
        %v661 = vpack.c.b16 %v619, %v616
        %v662 = vpack.c.b16 %v623, %v620
        %v663 = vpack.c.b16 %v624, %v621
        %v664 = vpack.c.b16 %v625, %v622
        %v665 = vpack.c.b16 %v629, %v626
        %v666 = vpack.c.b16 %v630, %v627
        %v667 = vpack.c.b16 %v631, %v628
        %v668 = vpack.c.b16 %v635, %v632
        %v669 = vpack.c.b16 %v636, %v633
        %v670 = vpack.c.b16 %v637, %v634
        %v671 = vpack.c.b16 %v641, %v638
        %v672 = vpack.c.b16 %v642, %v639
        %v673 = vpack.c.b16 %v643, %v640
        %v674 = vpack.c.b16 %v647, %v644
        %v675 = vpack.c.b16 %v648, %v645
        %v676 = vpack.c.b16 %v649, %v646
        %v677 = vpack.c.b16 %v653, %v650
        %v678 = vpack.c.b16 %v654, %v651
        %v679 = vpack.c.b16 %v655, %v652
        %704 = vmatpush.bf16.msra.mxu0 %v677
        %705 = vmatpush.bf16.msra.mxu0 %v674
        %706 = vmatpush.bf16.msra.mxu0 %v671
        %707 = vmatpush.bf16.msra.mxu0 %v668
        %708 = vmatpush.bf16.msra.mxu0 %v665
        %709 = vmatpush.bf16.msra.mxu0 %v662
        %710 = vmatpush.bf16.msra.mxu0 %v659
        %711 = vmatpush.bf16.msra.mxu0 %v656
        %712 = vmatmul.bf16.gmra.mxu0 %v568
        %v713 = vpop.f32.mrf.mxu0
        %v714 = vadd.f32 %v570, %v713
        %v715 = vpop.f32.mrf.mxu0
        %716 = vdwg.mxu0
        %717 = vmatpush.bf16.msra.mxu0 %v678
        %718 = vmatpush.bf16.msra.mxu0 %v675
        %719 = vmatpush.bf16.msra.mxu0 %v672
        %720 = vmatpush.bf16.msra.mxu0 %v669
        %721 = vmatpush.bf16.msra.mxu0 %v666
        %722 = vmatpush.bf16.msra.mxu0 %v663
        %723 = vmatpush.bf16.msra.mxu0 %v660
        %724 = vmatpush.bf16.msra.mxu0 %v657
        %725 = vmatmul.bf16.gmra.mxu0 %v568
        %v726 = vpop.f32.mrf.mxu0
        %v727 = vadd.f32 %v571, %v726
        %v728 = vpop.f32.mrf.mxu0
        %729 = vdwg.mxu0
        %730 = vmatpush.bf16.msra.mxu0 %v679
        %731 = vmatpush.bf16.msra.mxu0 %v676
        %732 = vmatpush.bf16.msra.mxu0 %v673
        %733 = vmatpush.bf16.msra.mxu0 %v670
        %734 = vmatpush.bf16.msra.mxu0 %v667
        %735 = vmatpush.bf16.msra.mxu0 %v664
        %736 = vmatpush.bf16.msra.mxu0 %v661
        %737 = vmatpush.bf16.msra.mxu0 %v658
        %738 = vmatmul.bf16.gmra.mxu0 %v568
        %v739 = vpop.f32.mrf.mxu0
        %v740 = vadd.f32 %v572, %v739
        %v741 = vpop.f32.mrf.mxu0
        %742 = vdwg.mxu0
        %v743 = vxor.u32 %v714, 2147483648
        %v744 = vmul.f32 %v743, 1.442695
        %v745 = vpow.pop %v744
        %v746 = vadd.f32 %v745, 1.0
        %v747 = vrcp.pop %v746
        %v748 = vmul.f32 %v746, %v747
        %v749 = vsub.f32 1.0, %v748
        %v750 = vmul.f32 %v747, %v749
        %v751 = vadd.f32 %v747, %v750
        %vm752 = vweird.f32 %v746
        %vm753 = vweird.f32 %v747
        %vm754 = vmor %vm752, %vm753
        %v755 = vsel %vm754, %v747, %v751
        %v756 = vand.u32 2147483647, %v746
        %vm757 = vcmp.eq.f32.partialorder %v756, 8.507059e+37
        %v758 = vand.u32 %v746, 2147483648
        %v759 = vor.u32 1.1754944e-38, %v758
        %v760 = vsel %vm757, %v759, %v755
        %v761 = vmul.f32 1.0, %v760
        %v762 = vtanh.pop %v727
        %v763 = vxor.u32 %v740, 2147483648
        %v764 = vmul.f32 %v763, 1.442695
        %v765 = vpow.pop %v764
        %v766 = vadd.f32 %v765, 1.0
        %v767 = vrcp.pop %v766
        %v768 = vmul.f32 %v766, %v767
        %v769 = vsub.f32 1.0, %v768
        %v770 = vmul.f32 %v767, %v769
        %v771 = vadd.f32 %v767, %v770
        %vm772 = vweird.f32 %v766
        %vm773 = vweird.f32 %v767
        %vm774 = vmor %vm772, %vm773
        %v775 = vsel %vm774, %v767, %v771
        %v776 = vand.u32 2147483647, %v766
        %vm777 = vcmp.eq.f32.partialorder %v776, 8.507059e+37
        %v778 = vand.u32 %v766, 2147483648
        %v779 = vor.u32 1.1754944e-38, %v778
        %v780 = vsel %vm777, %v779, %v775
        %v781 = vmul.f32 1.0, %v780
        %v782 = vmul.f32 %v761, %v762
        %v783 = vtanh.pop %v782
        %v784 = vmul.f32 %v781, %v783
        %785 = vst [vmem:[#allocation2] sm:$0xff] %v784
        %p786 = scmp.eq.s32.totalorder %s22, 2
        // Predicated region
        $region69: #{tpu_custom_call.1} parent=47 // pred_check
          %p787 = pneg %p786
        $region70: #{tpu_custom_call.1} parent=47 // pred_check_branch
          %789 = sbr.rel (%p787) target = $region72
        $region71: #{tpu_custom_call.1} parent=47 // pred_region
          %v790 = vld [vmem:[#allocation2] sm:$0xff]
          %v791 = vld [vmem:[%s5] sm:$0x1]
          %v793 = vperm.slane %v791, 0
          %v795 = vmul.f32 %v790, %v793
          %796 = vadd.xlane.f32.xlu0 %v795
          %v797 = vpop.xlane.xlu0 %796
          %v798 = vld [vmem:[#allocation3] sm:$0x1]
          %v800 = vperm.slane %v798, 0
          %v802 = vadd.f32 %v797, %v800
          %vm803 = vcmask 7168
          %804 = vst.msk [vmem:[%s7] sm:$0xff] %vm803, %v802
        $region72: #{tpu_custom_call.1} parent=47 // pred_fallthru
          _
        // Predicated region
        $region73: #{tpu_custom_call.1} parent=47 // pred_check
          %p805 = pneg %p192
        $region74: #{tpu_custom_call.1} parent=47 // pred_check_branch
          %807 = sbr.rel (%p805) target = $region76
        $region75: #{tpu_custom_call.1} parent=47 // pred_region
          _
        $region76: #{tpu_custom_call.1} parent=47 // pred_fallthru
          _
        // Predicated region
        $region77: #{tpu_custom_call.1} parent=47 // pred_check
          %p808 = pneg %p192
        $region78: #{tpu_custom_call.1} parent=47 // pred_check_branch
          %810 = sbr.rel (%p808) target = $region80
        $region79: #{tpu_custom_call.1} parent=47 // pred_region
          _
        $region80: #{tpu_custom_call.1} parent=47 // pred_fallthru
          _
      $region48: #{tpu_custom_call.1} parent=5 // pred_fallthru
        _
      %p811 = scmp.le.s32.totalorder 2, %s17
      // Predicated region
      $region81: #{tpu_custom_call.1} parent=5 // pred_check
        %p812 = pneg %p811
      $region82: #{tpu_custom_call.1} parent=5 // pred_check_branch
        %814 = sbr.rel (%p812) target = $region84
      $region83: #{tpu_custom_call.1} parent=5 // pred_region
        %s815 = ssub.s32 %s17, 2
      $region84: #{tpu_custom_call.1} parent=5 // pred_fallthru
        _
    $region6: #{tpu_custom_call.1} parent=1 // loop_footer
      %s21 = sadd.s32 1, %s17
    $region7: #{tpu_custom_call.1} parent=1 // loop_footer_branch
      %16 = sbr.rel target = $region3
    $region8: #{tpu_custom_call.1} parent=1 // loop_exit
      _
    %816 = vsyncpa [#allocation5], 1
    %s817 = scalar_lea.sflag [#allocation5], 1
    %818 = vsyncpa %s817, 1
    %819 = vsyncpa [#allocation7], 1

</llo_original>
